<compile_context>
chip_gen: v7x
topology: tpu7x:2x2x1
jax: 0.10.0
libtpu: 0.0.40
codegen_flags: <defaults>
</compile_context>

<pallas_src>
import jax
import jax.numpy as jnp
import numpy as np
from jax import lax
from jax.experimental import pallas as pl
from jax.experimental.pallas import tpu as pltpu

W_R, W_G, W_B = 0.299, 0.587, 0.114
_LANE = 128
_SUB = 8


def _cdiv(a, b):
    return -(-a // b)


def _round_up(a, m):
    return _cdiv(a, m) * m


def _round_down(a, m):
    return (a // m) * m


def _tpu_tuning():
    """Returns (num_tensorcores_to_split_over, target_block_bytes_per_input)."""
    kind = ""
    try:
        kind = (getattr(jax.devices()[0], "device_kind", "") or "").lower()
    except Exception:
        pass
    if "v5e" in kind or "v5 lite" in kind or "v5lite" in kind:
        return 1, 2 * 1024 * 1024          # ~95% of 0.82 TB/s roofline already
    if "v6" in kind:
        return 1, 4 * 1024 * 1024          # single TC, 1.4 TB/s
    if "v7" in kind or "7x" in kind:
        return 2, 6 * 1024 * 1024          # 2 TCs, 3.2 TB/s/TC, 64 MiB VMEM/TC
    return 1, 4 * 1024 * 1024              # conservative default


def _make_kernel(*, R, cols, tr, tn, nb_total, nb_inner, n_row_blocks):
    num_k = tn // _LANE
    col_mask_possible = nb_total * tn > cols     # some block has invalid lanes
    row_mask_possible = (R % tr) != 0            # last row block is ragged
    last_col_full = cols // tn                   # first ragged/duplicate block

    def kernel(w_ref, x_ref, gt_ref, out_ref, acc_ref):
        c = pl.program_id(0)                     # core split (columns)
        r = pl.program_id(1)                     # row block
        i = pl.program_id(2)                     # column block within core

        @pl.when(i == 0)
        def _():
            acc_ref[...] = jnp.zeros_like(acc_ref)

        @pl.when(jnp.logical_and(r == 0, i == 0))
        def _():
            out_ref[...] = jnp.zeros_like(out_ref)

        blk = c * nb_inner + i                   # global (unclamped) col block
        col_base = blk * tn
        row_base = r * tr

        def accum(masked):
            if masked:
                lane_iota = lax.broadcasted_iota(jnp.int32, (tr, _LANE), 1)
                row_iota = lax.broadcasted_iota(jnp.int32, (tr, _LANE), 0)
                row_ok = (row_base + row_iota) < R

            def step(k):
                start = k * _LANE
                if not isinstance(start, int):
                    start = pl.multiple_of(start, _LANE)
                xs = x_ref[:, pl.ds(start, _LANE)].astype(jnp.float32)
                gs = gt_ref[:, pl.ds(start, _LANE)].astype(jnp.float32)
                d = xs - gs
                dd = d * d
                if masked:
                    col_ok = (col_base + k * _LANE + lane_iota) < cols
                    dd = jnp.where(jnp.logical_and(col_ok, row_ok), dd, 0.0)
                acc_ref[...] += dd

            if num_k <= 16:
                for k in range(num_k):           # static slices, zero-cost views
                    step(k)
            else:
                def body(k, carry):
                    step(k)
                    return carry
                lax.fori_loop(0, num_k, body, 0, unroll=8)

        if not (col_mask_possible or row_mask_possible):
            accum(False)                         # fast path: masking never needed
        else:
            if col_mask_possible and row_mask_possible:
                needs = jnp.logical_or(blk >= last_col_full,
                                       r == n_row_blocks - 1)
            elif col_mask_possible:
                needs = blk >= last_col_full
            else:
                needs = r == n_row_blocks - 1

            @pl.when(needs)
            def _():
                accum(True)

            @pl.when(jnp.logical_not(needs))
            def _():
                accum(False)

        @pl.when(i == pl.num_programs(2) - 1)
        def _():
            row_sums = jnp.sum(acc_ref[...], axis=1, keepdims=True)   # (tr, 1)
            partial = jnp.sum(row_sums * w_ref[...])                  # scalar
            out_ref[...] = out_ref[...] + partial                     # acc over r

    return kernel


def _launch(x2d, gt2d, *, B, C, R, cols, num_cores, block_bytes):
    # ------------------------- tile sizing -------------------------
    block_elems = block_bytes // 4
    m = _cdiv(cols, _LANE)                        # number of 128-lane chunks

    if R * _LANE <= block_elems:
        tr = R                                    # full rows per block
        tn_cap = max(_LANE, _round_down(block_elems // R, _LANE))
    else:
        tn_cap = _LANE * min(4, m)                # keep >=512B contiguous rows
        tr = max(_SUB, _round_down(block_elems // tn_cap, _SUB))

    n_row_blocks = _cdiv(R, tr)
    R_pad = n_row_blocks * tr

    q_cap = max(1, tn_cap // _LANE)
    nb_total = _round_up(max(1, _cdiv(m, q_cap)), num_cores)
    q = _cdiv(m, nb_total)
    tn = q * _LANE
    nb_inner = nb_total // num_cores
    last_blk = _cdiv(cols, tn) - 1                # last block with valid columns

    # ------- per-row weights (channel weight with 1/(N*B) folded in) -------
    N = B * cols
    ch_w = np.zeros((C,), np.float32)
    ch_w[:3] = (W_R, W_G, W_B)                    # extra channels -> weight 0
    w_rows = np.tile(ch_w, B) * np.float32(1.0 / (float(N) * float(B)))
    w_rows = np.pad(w_rows, (0, R_pad - R))       # zero weight for padded rows
    w_col = jnp.asarray(w_rows.reshape(R_pad, 1))

    # ----------------------------- specs -----------------------------
    clamp_needed = (nb_total - 1) > last_blk      # never issue a fully-OOB DMA

    def col_index(c, i):
        b = c * nb_inner + i
        if clamp_needed:
            b = jnp.minimum(b, last_blk)          # duplicate block is masked out
        return b

    in_specs = [
        pl.BlockSpec((tr, 1), lambda c, r, i: (r, 0)),
        pl.BlockSpec((tr, tn), lambda c, r, i: (r, col_index(c, i))),
        pl.BlockSpec((tr, tn), lambda c, r, i: (r, col_index(c, i))),
    ]
    out_spec = pl.BlockSpec((_SUB, _LANE), lambda c, r, i: (c, 0))

    kernel = _make_kernel(R=R, cols=cols, tr=tr, tn=tn, nb_total=nb_total,
                          nb_inner=nb_inner, n_row_blocks=n_row_blocks)

    arb = getattr(pltpu, "ARBITRARY", "arbitrary")
    if num_cores > 1:
        core_sem = getattr(pltpu, "CORE_PARALLEL", None)
        if core_sem is None:
            core_sem = getattr(pltpu, "PARALLEL", "parallel")
    else:
        core_sem = arb
    dim_sems = (core_sem, arb, arb)

    vmem_limit = min(64 * 1024 * 1024,
                     max(32 * 1024 * 1024, 4 * block_bytes + 4 * 1024 * 1024))

    out = pl.pallas_call(
        kernel,
        out_shape=jax.ShapeDtypeStruct((num_cores * _SUB, _LANE), jnp.float32),
        grid_spec=pltpu.PrefetchScalarGridSpec(
            num_scalar_prefetch=0,
            grid=(num_cores, n_row_blocks, nb_inner),
            in_specs=in_specs,
            out_specs=out_spec,
            scratch_shapes=[pltpu.VMEM((tr, _LANE), jnp.float32)],
        ),
        compiler_params=pltpu.CompilerParams(
            dimension_semantics=dim_sems,
            vmem_limit_bytes=vmem_limit,
        ),
    )(w_col, x2d, gt2d)

    # Each core's partial is replicated across its (8,128) block; combine them.
    return jnp.sum(out[::_SUB, 0])


def l_color_loss(x, gt):
    """x, gt: (B, C>=3, H, W) arrays. Returns scalar float32 color loss."""
    B, C, H, W = x.shape
    assert C >= 3, "need at least 3 channels (R, G, B)"
    if C > 8:
        # Feature-map-like inputs: slicing RGB (one copy) beats streaming C/3x
        # the data through the kernel with zero weights.
        x, gt, C = x[:, :3], gt[:, :3], 3
    cols = H * W
    R = B * C
    # Free contiguous reshape: no transpose, no channel-slice copy, no padding.
    x2d = x.reshape(R, cols)
    gt2d = gt.reshape(R, cols)

    num_cores, block_bytes = _tpu_tuning()
    try:
        return _launch(x2d, gt2d, B=B, C=C, R=R, cols=cols,
                       num_cores=num_cores, block_bytes=block_bytes)
    except Exception:
        if num_cores == 1:
            raise
        # Core-parallel lowering unavailable on this chip/runtime: 1-core launch.
        return _launch(x2d, gt2d, B=B, C=C, R=R, cols=cols,
                       num_cores=1, block_bytes=block_bytes)


def _reference(x, gt):
    B = x.shape[0]
    mse = lambda a, b: jnp.mean((a - b).astype(jnp.float32) ** 2)
    return (W_R * mse(x[:, 0], gt[:, 0])
            + W_G * mse(x[:, 1], gt[:, 1])
            + W_B * mse(x[:, 2], gt[:, 2])) / B


if __name__ == "__main__":
    key = jax.random.PRNGKey(0)
    k1, k2 = jax.random.split(key)
    B, C, H, W = 2, 4, 16, 16          # C=4 exercises the extra-channel path
    x = jax.random.uniform(k1, (B, C, H, W), dtype=jnp.float32)
    gt = jax.random.uniform(k2, (B, C, H, W), dtype=jnp.float32)

    loss = l_color_loss(x, gt)
    jax.block_until_ready(loss)

    ref = _reference(x, gt)
    assert jnp.allclose(loss, ref, rtol=1e-5, atol=1e-6), (loss, ref)
    print("KERNEL_OK")
</pallas_src>

<mosaic_0001>
module attributes {stable_mosaic.version = 11 : i64} {
  func.func @kernel(%arg0: i32, %arg1: i32, %arg2: i32, %arg3: memref<8x1xf32, #tpu.memory_space<vmem>>, %arg4: memref<8x256xf32, #tpu.memory_space<vmem>>, %arg5: memref<8x256xf32, #tpu.memory_space<vmem>>, %arg6: memref<8x128xf32, #tpu.memory_space<vmem>>, %arg7: memref<8x128xf32, #tpu.memory_space<vmem>>) attributes {dimension_semantics = [#tpu.dimension_semantics<arbitrary>, #tpu.dimension_semantics<arbitrary>, #tpu.dimension_semantics<arbitrary>], iteration_bounds = array<i64: 1, 1, 1>, scalar_prefetch = 0 : i64, scratch_operands = 1 : i64, tpu.core_type = #tpu.core_type<tc>, window_params = [{transform_indices = @transform_0, window_bounds = array<i64: 8, 1>}, {transform_indices = @transform_1, window_bounds = array<i64: 8, 256>}, {transform_indices = @transform_2, window_bounds = array<i64: 8, 256>}, {transform_indices = @transform_3, window_bounds = array<i64: 8, 128>}]} {
    %c0_i32 = arith.constant 0 : i32
    %0 = arith.cmpi eq, %arg2, %c0_i32 : i32
    %1 = arith.extui %0 : i1 to i32
    %c0_i32_0 = arith.constant 0 : i32
    %2 = arith.cmpi ne, %1, %c0_i32_0 : i32
    scf.if %2 {
      %cst = arith.constant 0.000000e+00 : f32
      %25 = vector.broadcast %cst : f32 to vector<8x128xf32>
      %c0_20 = arith.constant 0 : index
      %c0_21 = arith.constant 0 : index
      %26 = vector.load %arg7[%c0_20, %c0_21] : memref<8x128xf32, #tpu.memory_space<vmem>>, vector<8x128xf32>
      tpu.vector_store %arg7[%c0_20, %c0_21], %25 {strides = array<i32>} : memref<8x128xf32, #tpu.memory_space<vmem>>, vector<8x128xf32>,
    } else {
    }
    %c0_i32_1 = arith.constant 0 : i32
    %3 = arith.cmpi eq, %arg1, %c0_i32_1 : i32
    %c0_i32_2 = arith.constant 0 : i32
    %4 = arith.cmpi eq, %arg2, %c0_i32_2 : i32
    %5 = arith.andi %3, %4 : i1
    %6 = arith.extui %5 : i1 to i32
    %c0_i32_3 = arith.constant 0 : i32
    %7 = arith.cmpi ne, %6, %c0_i32_3 : i32
    scf.if %7 {
      %cst = arith.constant 0.000000e+00 : f32
      %25 = vector.broadcast %cst : f32 to vector<8x128xf32>
      %c0_20 = arith.constant 0 : index
      %c0_21 = arith.constant 0 : index
      %26 = vector.load %arg6[%c0_20, %c0_21] : memref<8x128xf32, #tpu.memory_space<vmem>>, vector<8x128xf32>
      tpu.vector_store %arg6[%c0_20, %c0_21], %25 {strides = array<i32>} : memref<8x128xf32, #tpu.memory_space<vmem>>, vector<8x128xf32>,
    } else {
    }
    %c0 = arith.constant 0 : index
    %c0_4 = arith.constant 0 : index
    %8 = vector.load %arg4[%c0, %c0_4] : memref<8x256xf32, #tpu.memory_space<vmem>>, vector<8x128xf32>
    %c0_5 = arith.constant 0 : index
    %c0_6 = arith.constant 0 : index
    %9 = vector.load %arg5[%c0_5, %c0_6] : memref<8x256xf32, #tpu.memory_space<vmem>>, vector<8x128xf32>
    %10 = arith.subf %8, %9 : vector<8x128xf32>
    %11 = arith.mulf %10, %10 : vector<8x128xf32>
    %c0_7 = arith.constant 0 : index
    %c0_8 = arith.constant 0 : index
    %12 = vector.load %arg7[%c0_7, %c0_8] : memref<8x128xf32, #tpu.memory_space<vmem>>, vector<8x128xf32>
    %13 = arith.addf %12, %11 : vector<8x128xf32>
    %c0_9 = arith.constant 0 : index
    %c0_10 = arith.constant 0 : index
    %14 = vector.load %arg7[%c0_9, %c0_10] : memref<8x128xf32, #tpu.memory_space<vmem>>, vector<8x128xf32>
    tpu.vector_store %arg7[%c0_9, %c0_10], %13 {strides = array<i32>} : memref<8x128xf32, #tpu.memory_space<vmem>>, vector<8x128xf32>,
    %c0_11 = arith.constant 0 : index
    %c128 = arith.constant 128 : index
    %15 = vector.load %arg4[%c0_11, %c128] : memref<8x256xf32, #tpu.memory_space<vmem>>, vector<8x128xf32>
    %c0_12 = arith.constant 0 : index
    %c128_13 = arith.constant 128 : index
    %16 = vector.load %arg5[%c0_12, %c128_13] : memref<8x256xf32, #tpu.memory_space<vmem>>, vector<8x128xf32>
    %17 = arith.subf %15, %16 : vector<8x128xf32>
    %18 = arith.mulf %17, %17 : vector<8x128xf32>
    %c0_14 = arith.constant 0 : index
    %c0_15 = arith.constant 0 : index
    %19 = vector.load %arg7[%c0_14, %c0_15] : memref<8x128xf32, #tpu.memory_space<vmem>>, vector<8x128xf32>
    %20 = arith.addf %19, %18 : vector<8x128xf32>
    %c0_16 = arith.constant 0 : index
    %c0_17 = arith.constant 0 : index
    %21 = vector.load %arg7[%c0_16, %c0_17] : memref<8x128xf32, #tpu.memory_space<vmem>>, vector<8x128xf32>
    tpu.vector_store %arg7[%c0_16, %c0_17], %20 {strides = array<i32>} : memref<8x128xf32, #tpu.memory_space<vmem>>, vector<8x128xf32>,
    %c0_i32_18 = arith.constant 0 : i32
    %22 = arith.cmpi eq, %arg2, %c0_i32_18 : i32
    %23 = arith.extui %22 : i1 to i32
    %c0_i32_19 = arith.constant 0 : i32
    %24 = arith.cmpi ne, %23, %c0_i32_19 : i32
    scf.if %24 {
      %c0_20 = arith.constant 0 : index
      %c0_21 = arith.constant 0 : index
      %25 = vector.load %arg7[%c0_20, %c0_21] : memref<8x128xf32, #tpu.memory_space<vmem>>, vector<8x128xf32>
      %cst = arith.constant dense<0.000000e+00> : vector<8xf32>
      %26 = vector.multi_reduction <add>, %25, %cst [1] : vector<8x128xf32> to vector<8xf32>
      %27 = vector.shape_cast %26 : vector<8xf32> to vector<8x1xf32>
      %c0_22 = arith.constant 0 : index
      %c0_23 = arith.constant 0 : index
      %28 = vector.load %arg3[%c0_22, %c0_23] : memref<8x1xf32, #tpu.memory_space<vmem>>, vector<8x1xf32>
      %29 = arith.mulf %27, %28 : vector<8x1xf32>
      %30 = vector.shape_cast %29 : vector<8x1xf32> to vector<1x8x1xf32>
      %cst_24 = arith.constant dense<0.000000e+00> : vector<1xf32>
      %31 = vector.multi_reduction <add>, %30, %cst_24 [1, 2] : vector<1x8x1xf32> to vector<1xf32>
      %32 = vector.shape_cast %31 : vector<1xf32> to vector<1x1x1xf32>
      %33 = vector.extract %32[0, 0, 0] : f32 from vector<1x1x1xf32>
      %c0_25 = arith.constant 0 : index
      %c0_26 = arith.constant 0 : index
      %34 = vector.load %arg6[%c0_25, %c0_26] : memref<8x128xf32, #tpu.memory_space<vmem>>, vector<8x128xf32>
      %35 = vector.broadcast %33 : f32 to vector<8x128xf32>
      %36 = arith.addf %34, %35 : vector<8x128xf32>
      %c0_27 = arith.constant 0 : index
      %c0_28 = arith.constant 0 : index
      %37 = vector.load %arg6[%c0_27, %c0_28] : memref<8x128xf32, #tpu.memory_space<vmem>>, vector<8x128xf32>
      tpu.vector_store %arg6[%c0_27, %c0_28], %36 {strides = array<i32>} : memref<8x128xf32, #tpu.memory_space<vmem>>, vector<8x128xf32>,
    } else {
    }
    return
  }
  func.func @transform_0(%arg0: i32, %arg1: i32, %arg2: i32) -> (i32, i32) {
    %c0_i32 = arith.constant 0 : i32
    %c0_i32_0 = arith.constant 0 : i32
    return %arg1, %c0_i32 : i32, i32
  }
  func.func @transform_1(%arg0: i32, %arg1: i32, %arg2: i32) -> (i32, i32) {
    %c1_i32 = arith.constant 1 : i32
    %0 = arith.muli %arg0, %c1_i32 : i32
    %1 = arith.addi %0, %arg2 : i32
    %c0_i32 = arith.constant 0 : i32
    return %arg1, %1 : i32, i32
  }
  func.func @transform_2(%arg0: i32, %arg1: i32, %arg2: i32) -> (i32, i32) {
    %c1_i32 = arith.constant 1 : i32
    %0 = arith.muli %arg0, %c1_i32 : i32
    %1 = arith.addi %0, %arg2 : i32
    %c0_i32 = arith.constant 0 : i32
    return %arg1, %1 : i32, i32
  }
  func.func @transform_3(%arg0: i32, %arg1: i32, %arg2: i32) -> (i32, i32) {
    %c0_i32 = arith.constant 0 : i32
    %c0_i32_0 = arith.constant 0 : i32
    return %arg0, %c0_i32 : i32, i32
  }
}

</mosaic_0001>

<llo_original>
// kernel: tpu_custom_call.1
$region0: #{tpu_custom_call.1}
  #allocation0 [shape = 'u32[]', space=smem, size = 0x4, offset = 0x4, fixed_abs, tag = 'smem constant byte address 0x4 - core index']
  #allocation1 [shape = 'u32[144,128]{1,0:T(1,128)}', space=vmem, size = 0x12000, scoped, tag = 'internal scratch']
  #allocation2 [shape = 'f32[8,128]{1,0:T(8,128)}', space=vmem, size = 0x1000, scoped, tag = 'scratch operand']
  %s0 = inlined_call_operand.vmem [shape: f32[8,1], index: 0, kind: input, shape index: {}]
  %s1 = inlined_call_operand.hbm [shape: f32[8,256], index: 1, kind: input, shape index: {}]
  %s2 = inlined_call_operand.vmem [shape: f32[8,256], index: 2, kind: input, shape index: {}]
  %s3 = inlined_call_operand.hbm [shape: f32[8,128], index: 3, kind: output, shape index: {}]
  %s4 = sld [smem:[#allocation0]]
  $region38: #{tpu_custom_call.1} parent=0
    _
  %s6 = ssub.s32 1, %s4
  %s7 = scalar_select 0, %s6, %s4
  $region1: #{tpu_custom_call.1} parent=0
    #allocation3 [shape = 'u8[8192]{0}', space=vmem, size = 0x2000, scoped, tag = 'input window, operand 1, single buffered']
    #allocation4 [shape = 's32[1]{0}', space=sflag, size = 0x4, scoped, tag = 'scoped memory for tpu_custom_call.1']
    #allocation5 [shape = 's32[1]{0}', space=sflag, size = 0x4, scoped, tag = 'scoped memory for tpu_custom_call.1']
    #allocation6 [shape = 'u8[4096]{0}', space=vmem, size = 0x1000, scoped, tag = 'output window, operand 0, single buffered']
    %8 = vsyncpa [#allocation4], 0
    %9 = vsyncpa [#allocation5], 0
    // Predicated region
    $region2: #{tpu_custom_call.1} parent=1 // pred_check
      _
    $region3: #{tpu_custom_call.1} parent=1 // pred_check_branch
      %11 = sbr.rel (0) target = $region5
    $region4: #{tpu_custom_call.1} parent=1 // pred_region
      _
    $region5: #{tpu_custom_call.1} parent=1 // pred_fallthru
      _
    // Predicated region
    $region6: #{tpu_custom_call.1} parent=1 // pred_check
      _
    $region7: #{tpu_custom_call.1} parent=1 // pred_check_branch
      %13 = sbr.rel (0) target = $region9
    $region8: #{tpu_custom_call.1} parent=1 // pred_region
      %s14 = sadd.s32 0, 0
      %s15 = smul.u32 2, %s14
      %s17 = ssub.s32 256, 256
      %18 = vsyncadd [#allocation4], %s17
      %s19 = smul.addr %s15, 128
      %s20 = scalar_lea.hbm %s1, %s19
      %s22 = sshll.u32 [#allocation3], 4
      %s23 = int_to_ptr.vmem [resolvable:$true] %s22
      %25 = dma.hbm_to_vmem [thread:$0]  %s20, 256, %s23, [#allocation4]
    $region9: #{tpu_custom_call.1} parent=1 // pred_fallthru
      _
    // Predicated region
    $region10: #{tpu_custom_call.1} parent=1 // pred_check
      _
    $region11: #{tpu_custom_call.1} parent=1 // pred_check_branch
      %27 = sbr.rel (0) target = $region13
    $region12: #{tpu_custom_call.1} parent=1 // pred_region
      %s28 = sadd.s32 0, 0
      %s29 = smul.u32 2, %s28
      %p30 = scmp.lt.s32.totalorder %s29, 1
      %s31 = scalar_select %p30, %s29, 1
      %s32 = smul.addr %s31, 8
      %s33 = scalar_lea.vmem %s2, %s32
      %s34 = sadd.s32 0, 0
      %s35 = smul.u32 2, %s34
    $region13: #{tpu_custom_call.1} parent=1 // pred_fallthru
      _
    // Predicated region
    $region14: #{tpu_custom_call.1} parent=1 // pred_check
      _
    $region15: #{tpu_custom_call.1} parent=1 // pred_check_branch
      %37 = sbr.rel (0) target = $region17
    $region16: #{tpu_custom_call.1} parent=1 // pred_region
      %38 = dma.done [#allocation4], 256
    $region17: #{tpu_custom_call.1} parent=1 // pred_fallthru
      _
    %s39 = sadd.s32 0, 0
    %s40 = smul.u32 2, %s39
    %p41 = scmp.lt.s32.totalorder %s40, 1
    %s42 = scalar_select %p41, %s40, 1
    %s43 = smul.addr %s42, 8
    %s44 = scalar_lea.vmem %s2, %s43
    %s45 = sadd.s32 0, 0
    %s46 = smul.u32 2, %s45
    %s47 = sadd.s32 0, 0
    %s48 = smul.u32 2, %s47
    %p49 = scmp.lt.s32.totalorder %s48, 1
    %s50 = scalar_select %p49, %s48, 1
    %s51 = smul.addr %s50, 8
    %s52 = scalar_lea.vmem %s2, %s51
    %s53 = sadd.s32 0, 0
    %s54 = smul.u32 2, %s53
    %p55 = scmp.eq.s32.totalorder 0, 0
    // Predicated region
    $region18: #{tpu_custom_call.1} parent=1 // pred_check
      %p56 = pneg %p55
    $region19: #{tpu_custom_call.1} parent=1 // pred_check_branch
      %58 = sbr.rel (%p56) target = $region21
    $region20: #{tpu_custom_call.1} parent=1 // pred_region
      %59 = vst [vmem:[#allocation2] sm:$0xff] 0.0
    $region21: #{tpu_custom_call.1} parent=1 // pred_fallthru
      _
    %p60 = scmp.eq.s32.totalorder 0, 0
    %p61 = pnand %p60, %p55
    %p62 = pneg %p61
    // Predicated region
    $region22: #{tpu_custom_call.1} parent=1 // pred_check
      _
    $region23: #{tpu_custom_call.1} parent=1 // pred_check_branch
      %64 = sbr.rel (%p61) target = $region25
    $region24: #{tpu_custom_call.1} parent=1 // pred_region
      %65 = vst [vmem:[#allocation6] sm:$0xff] 0.0
    $region25: #{tpu_custom_call.1} parent=1 // pred_fallthru
      _
    %v66 = vld [vmem:[#allocation3] sm:$0xff]
    %v67 = vld [vmem:[%s52] sm:$0xff]
    %v68 = vsub.f32 %v66, %v67
    %v69 = vmul.f32 %v68, %v68
    %v70 = vld [vmem:[#allocation2] sm:$0xff]
    %v71 = vadd.f32 %v70, %v69
    %72 = vst [vmem:[#allocation2] sm:$0xff] %v71
    %v73 = vld [vmem:[#allocation3 + $0x8] sm:$0xff]
    %v74 = vld [vmem:[%s52 + $0x8] sm:$0xff]
    %v75 = vsub.f32 %v73, %v74
    %v76 = vmul.f32 %v75, %v75
    %v77 = vld [vmem:[#allocation2] sm:$0xff]
    %v78 = vadd.f32 %v77, %v76
    %79 = vst [vmem:[#allocation2] sm:$0xff] %v78
    // Predicated region
    $region26: #{tpu_custom_call.1} parent=1 // pred_check
      %p80 = pneg %p55
    $region27: #{tpu_custom_call.1} parent=1 // pred_check_branch
      %82 = sbr.rel (%p80) target = $region29
    $region28: #{tpu_custom_call.1} parent=1 // pred_region
      %v83 = vld [vmem:[#allocation2] sm:$0xff]
      %84 = vadd.xlane.f32.xlu0 %v83
      %v85 = vpop.xlane.xlu0 %84
      %v86 = vld [vmem:[%s0] sm:$0xff]
      %v87 = vmul.f32 %v85, %v86
      %vm88 = vcmask 7168
      %v89 = vsel %vm88, %v87, 0.0
      %90 = vadd.xlane.f32.xlu0 %v89
      %v91 = vpop.xlane.xlu0 %90
      %v92 = vrot.slane %v91, 4
      %v93 = vadd.f32 %v91, %v92
      %v94 = vrot.slane %v93, 2
      %v95 = vadd.f32 %v93, %v94
      %v96 = vrot.slane %v95, 1
      %v97 = vadd.f32 %v95, %v96
      %s98 = vtos %v97
      %v99 = vld [vmem:[#allocation6] sm:$0xff]
      %v100 = vstv %s98
      %v101 = vadd.f32 %v99, %v100
      %102 = vst [vmem:[#allocation6] sm:$0xff] %v101
    $region29: #{tpu_custom_call.1} parent=1 // pred_fallthru
      _
    // Predicated region
    $region30: #{tpu_custom_call.1} parent=1 // pred_check
      _
    $region31: #{tpu_custom_call.1} parent=1 // pred_check_branch
      %104 = sbr.rel (0) target = $region33
    $region32: #{tpu_custom_call.1} parent=1 // pred_region
      %s106 = ssub.s32 128, 128
      %107 = vsyncadd [#allocation5], %s106
      %s109 = sshll.u32 [#allocation6], 4
      %s110 = int_to_ptr.vmem [resolvable:$true] %s109
      %112 = dma.vmem_to_hbm [thread:$0]  %s110, 128, %s3, [#allocation5]
    $region33: #{tpu_custom_call.1} parent=1 // pred_fallthru
      _
    // Predicated region
    $region34: #{tpu_custom_call.1} parent=1 // pred_check
      _
    $region35: #{tpu_custom_call.1} parent=1 // pred_check_branch
      %114 = sbr.rel (0) target = $region37
    $region36: #{tpu_custom_call.1} parent=1 // pred_region
      %115 = dma.done [#allocation5], 128
    $region37: #{tpu_custom_call.1} parent=1 // pred_fallthru
      _
    %116 = vsyncpa [#allocation4], 1
    %117 = vsyncpa [#allocation5], 1

</llo_original>
